<compile_context>
chip_gen: v7x
topology: tpu7x:2x2x1
jax: 0.10.0
libtpu: 0.0.40
codegen_flags: <defaults>
</compile_context>

<pallas_src>
import functools

import jax
import jax.numpy as jnp
from jax.experimental import pallas as pl
from jax.experimental.pallas import tpu as pltpu

_MAX_TB = 16384                    # sanity cap on batch-tile rows
_MIN_STEP_BYTES = 2 * 1024 * 1024  # aim for >= ~2 MiB of input per grid step
_TARGET_TILES = 8                  # enough tiles for megacore + pipeline overlap


def _round_up(x, m):
    return -(-x // m) * m


def _physical_vmem_bytes():
    """Per-generation VMEM capacity; conservative (v7x) fallback."""
    try:
        info = pltpu.get_tpu_info()
        v = getattr(info, "vmem_capacity_bytes", None)
        if v:
            return int(v)
    except Exception:
        pass
    return 64 * 1024 * 1024  # v7x per-TensorCore physical VMEM


def _choose_tiling(batch, d, itemsize, n_streams):
    """Pick (TB rows, vmem_limit_bytes) for the streaming kernel."""
    phys = _physical_vmem_bytes()
    # v7x (64 MiB physical) -> 48 MiB scoped; v5e/v6e (128 MiB) -> 96 MiB.
    vmem_limit = int(min(phys * 3 // 4, 96 * 1024 * 1024))

    lanes = _round_up(d, 128)  # a (tb, d) block physically occupies >=128 lanes
    per_row = (n_streams * 2 * lanes * itemsize      # double-buffered input blocks
               + (n_streams + 2) * lanes * 4)        # in-kernel f32 temporaries
    usable = max(per_row * 8, vmem_limit - 4 * 1024 * 1024)  # compiler headroom
    tb_vmem = max(8, min(_MAX_TB, (usable // per_row) // 8 * 8))

    batch8 = _round_up(batch, 8)
    tb = min(tb_vmem, batch8)

    # Split large batches over >= _TARGET_TILES grid steps (megacore on v7x,
    # pipeline overlap everywhere) as long as each step still moves >= ~2 MiB.
    tb_floor = _round_up(max(1, _MIN_STEP_BYTES // max(1, n_streams * d * itemsize)), 8)
    floor = max(8, min(tb_floor, tb_vmem))
    tb_split = max(8, (batch8 // _TARGET_TILES) // 8 * 8)
    if tb_split >= floor:
        tb = min(tb, tb_split)

    return max(8, tb), vmem_limit


def _bpr_kernel(*refs, tb, n_valid, needs_mask, has_ego):
    if has_ego:
        user_ref, pos_ref, neg_ref, ru_ref, rp_ref, rn_ref, out_ref = refs
    else:
        user_ref, pos_ref, neg_ref, out_ref = refs

    user = user_ref[...].astype(jnp.float32)   # (TB, D)
    pos = pos_ref[...].astype(jnp.float32)     # (TB, D)
    neg = neg_ref[...].astype(jnp.float32)     # (TB, D)

    # Per-row score gap -> (TB, 1); numerically stable softplus.
    x = jnp.sum(user * (neg - pos), axis=-1, keepdims=True)
    sp = jnp.maximum(x, 0.0) + jnp.log1p(jnp.exp(-jnp.abs(x)))

    # Regularisation rows -> (TB, 1).
    if has_ego:
        ru = ru_ref[...].astype(jnp.float32)
        rp = rp_ref[...].astype(jnp.float32)
        rn = rn_ref[...].astype(jnp.float32)
        reg = jnp.sum(ru * ru + rp * rp + rn * rn, axis=-1, keepdims=True)
    else:
        reg = jnp.sum(user * user + pos * pos + neg * neg, axis=-1, keepdims=True)

    if needs_mask:
        # Padded index rows gather *real* (nonzero) embeddings, so both the
        # softplus and the reg contributions of those rows must be masked.
        row = pl.program_id(0) * tb + jax.lax.broadcasted_iota(jnp.int32, (tb, 1), 0)
        valid = row < n_valid
        sp = jnp.where(valid, sp, 0.0)
        reg = jnp.where(valid, reg, 0.0)

    # Pack both per-tile partial sums into one (1, 2) block: lane 0 = softplus
    # sum, lane 1 = reg sum.  Broadcast/select avoids a concat and leaves a
    # single cross-sublane reduce + single writeback DMA per grid step.
    is_col0 = jax.lax.broadcasted_iota(jnp.int32, (1, 2), 1) == 0
    both = jnp.where(is_col0, sp, reg)                    # (TB, 2)
    out_ref[...] = jnp.sum(both, axis=0, keepdims=True)   # (1, 2)


def bpr_forward(user_embedding, item_embedding, u, i, j,
                user_embedding_ego=None, item_embedding_ego=None):
    """Mirrors BPR.forward. Returns (bpr_loss, reg_loss)."""
    has_ego = (user_embedding_ego is not None) and (item_embedding_ego is not None)

    batch = int(u.shape[0])
    d = int(user_embedding.shape[1])
    n_streams = 6 if has_ego else 3

    dtypes = [user_embedding.dtype, item_embedding.dtype]
    if has_ego:
        dtypes += [user_embedding_ego.dtype, item_embedding_ego.dtype]
    itemsize = max(jnp.dtype(t).itemsize for t in dtypes)

    tb, vmem_limit = _choose_tiling(batch, d, itemsize, n_streams)
    num_tiles = pl.cdiv(batch, tb)
    batch_pad = num_tiles * tb
    needs_mask = batch_pad != batch

    # Pad the cheap 1-D index vectors (NOT the gathered [B, D] tensors) so the
    # gathered arrays come out already tile-aligned.  Index 0 is always valid.
    if needs_mask:
        padn = batch_pad - batch
        u = jnp.pad(u, (0, padn))
        i = jnp.pad(i, (0, padn))
        j = jnp.pad(j, (0, padn))

    # Row gather in the table dtype (no f32 upcast -> no extra HBM traffic).
    operands = [jnp.take(user_embedding, u, axis=0),
                jnp.take(item_embedding, i, axis=0),
                jnp.take(item_embedding, j, axis=0)]
    if has_ego:
        operands += [jnp.take(user_embedding_ego, u, axis=0),
                     jnp.take(item_embedding_ego, i, axis=0),
                     jnp.take(item_embedding_ego, j, axis=0)]

    kernel = functools.partial(_bpr_kernel, tb=tb, n_valid=batch,
                               needs_mask=needs_mask, has_ego=has_ego)

    part = pl.pallas_call(
        kernel,
        out_shape=jax.ShapeDtypeStruct((num_tiles, 1, 2), jnp.float32),
        grid=(num_tiles,),
        in_specs=[pl.BlockSpec((tb, d), lambda b: (b, 0)) for _ in operands],
        out_specs=pl.BlockSpec((None, 1, 2), lambda b: (b, 0, 0)),
        compiler_params=pltpu.CompilerParams(
            dimension_semantics=("parallel",),
            vmem_limit_bytes=vmem_limit),
    )(*operands)

    sums = jnp.sum(part, axis=0)           # (1, 2): [softplus sum, reg sum]
    inv_n = 1.0 / batch
    bpr_loss = sums[0, 0] * inv_n
    if has_ego:
        reg_loss = 0.5 * sums[0, 1] * inv_n
    else:
        reg_loss = sums[0, 1] * inv_n
    return bpr_loss, reg_loss


def _reference(user_embedding, item_embedding, u, i, j,
               user_embedding_ego=None, item_embedding_ego=None):
    user = user_embedding[u]
    pos = item_embedding[i]
    neg = item_embedding[j]
    x = jnp.sum(user * neg, axis=1) - jnp.sum(user * pos, axis=1)
    ref_bpr = jnp.mean(jax.nn.softplus(x))
    if user_embedding_ego is None or item_embedding_ego is None:
        ref_reg = jnp.mean(jnp.sum(user ** 2, axis=-1)
                           + jnp.sum(pos ** 2 + neg ** 2, axis=-1))
    else:
        u0 = user_embedding_ego[u]
        p0 = item_embedding_ego[i]
        n0 = item_embedding_ego[j]
        ref_reg = 0.5 * (jnp.sum(u0 ** 2) + jnp.sum(p0 ** 2)
                         + jnp.sum(n0 ** 2)) / u.shape[0]
    return ref_bpr, ref_reg


if __name__ == "__main__":
    key = jax.random.PRNGKey(0)
    k1, k2, k3, k4, k5, k6, k7 = jax.random.split(key, 7)

    num_users, num_items, d, batch = 16, 32, 32, 16

    user_embedding = jax.random.normal(k1, (num_users, d), jnp.float32) * 0.1
    item_embedding = jax.random.normal(k2, (num_items, d), jnp.float32) * 0.1
    u = jax.random.randint(k3, (batch,), 0, num_users, dtype=jnp.int32)
    i = jax.random.randint(k4, (batch,), 0, num_items, dtype=jnp.int32)
    j = jax.random.randint(k5, (batch,), 0, num_items, dtype=jnp.int32)

    # Default (ego=None) branch.
    bpr_loss, reg_loss = bpr_forward(user_embedding, item_embedding, u, i, j)
    jax.block_until_ready((bpr_loss, reg_loss))
    ref_bpr, ref_reg = _reference(user_embedding, item_embedding, u, i, j)
    assert jnp.allclose(bpr_loss, ref_bpr, atol=1e-5, rtol=1e-5), (bpr_loss, ref_bpr)
    assert jnp.allclose(reg_loss, ref_reg, atol=1e-5, rtol=1e-5), (reg_loss, ref_reg)

    # Ragged batch -> index padding + in-kernel mask path.
    b2 = 13
    bpr2, reg2 = bpr_forward(user_embedding, item_embedding, u[:b2], i[:b2], j[:b2])
    jax.block_until_ready((bpr2, reg2))
    ref_bpr2, ref_reg2 = _reference(user_embedding, item_embedding,
                                    u[:b2], i[:b2], j[:b2])
    assert jnp.allclose(bpr2, ref_bpr2, atol=1e-5, rtol=1e-5), (bpr2, ref_bpr2)
    assert jnp.allclose(reg2, ref_reg2, atol=1e-5, rtol=1e-5), (reg2, ref_reg2)

    # Ego branch (norm-based regularisation).
    user_ego = jax.random.normal(k6, (num_users, d), jnp.float32) * 0.1
    item_ego = jax.random.normal(k7, (num_items, d), jnp.float32) * 0.1
    bpr3, reg3 = bpr_forward(user_embedding, item_embedding, u, i, j,
                             user_ego, item_ego)
    jax.block_until_ready((bpr3, reg3))
    ref_bpr3, ref_reg3 = _reference(user_embedding, item_embedding, u, i, j,
                                    user_ego, item_ego)
    assert jnp.allclose(bpr3, ref_bpr3, atol=1e-5, rtol=1e-5), (bpr3, ref_bpr3)
    assert jnp.allclose(reg3, ref_reg3, atol=1e-5, rtol=1e-5), (reg3, ref_reg3)

    print("KERNEL_OK")
</pallas_src>

<mosaic_0001>
module attributes {stable_mosaic.version = 11 : i64} {
  func.func @_bpr_kernel(%arg0: i32, %arg1: memref<16x32xf32, #tpu.memory_space<vmem>>, %arg2: memref<16x32xf32, #tpu.memory_space<vmem>>, %arg3: memref<16x32xf32, #tpu.memory_space<vmem>>, %arg4: memref<1x1x2xf32, #tpu.memory_space<vmem>>) attributes {dimension_semantics = [#tpu.dimension_semantics<parallel>], iteration_bounds = array<i64: 1>, scalar_prefetch = 0 : i64, scratch_operands = 0 : i64, tpu.core_type = #tpu.core_type<tc>, window_params = [{transform_indices = @transform_0, window_bounds = array<i64: 16, 32>}, {transform_indices = @transform_1, window_bounds = array<i64: 16, 32>}, {transform_indices = @transform_2, window_bounds = array<i64: 16, 32>}, {transform_indices = @transform_3, window_bounds = array<i64: 1, 1, 2>}]} {
    %c0 = arith.constant 0 : index
    %c0_0 = arith.constant 0 : index
    %0 = vector.load %arg1[%c0, %c0_0] : memref<16x32xf32, #tpu.memory_space<vmem>>, vector<16x32xf32>
    %c0_1 = arith.constant 0 : index
    %c0_2 = arith.constant 0 : index
    %1 = vector.load %arg2[%c0_1, %c0_2] : memref<16x32xf32, #tpu.memory_space<vmem>>, vector<16x32xf32>
    %c0_3 = arith.constant 0 : index
    %c0_4 = arith.constant 0 : index
    %2 = vector.load %arg3[%c0_3, %c0_4] : memref<16x32xf32, #tpu.memory_space<vmem>>, vector<16x32xf32>
    %3 = arith.subf %2, %1 : vector<16x32xf32>
    %4 = arith.mulf %0, %3 : vector<16x32xf32>
    %cst = arith.constant dense<0.000000e+00> : vector<16xf32>
    %5 = vector.multi_reduction <add>, %4, %cst [1] : vector<16x32xf32> to vector<16xf32>
    %6 = vector.shape_cast %5 : vector<16xf32> to vector<16x1xf32>
    %cst_5 = arith.constant 0.000000e+00 : f32
    %7 = vector.broadcast %cst_5 : f32 to vector<16x1xf32>
    %8 = arith.maximumf %6, %7 : vector<16x1xf32>
    %9 = math.absf %6 : vector<16x1xf32>
    %cst_6 = arith.constant 0.000000e+00 : f32
    %10 = vector.broadcast %cst_6 : f32 to vector<16x1xf32>
    %11 = arith.subf %10, %9 : vector<16x1xf32>
    %12 = math.exp %11 : vector<16x1xf32>
    %13 = math.log1p %12 : vector<16x1xf32>
    %14 = arith.addf %8, %13 : vector<16x1xf32>
    %15 = arith.mulf %0, %0 : vector<16x32xf32>
    %16 = arith.mulf %1, %1 : vector<16x32xf32>
    %17 = arith.addf %15, %16 : vector<16x32xf32>
    %18 = arith.mulf %2, %2 : vector<16x32xf32>
    %19 = arith.addf %17, %18 : vector<16x32xf32>
    %cst_7 = arith.constant dense<0.000000e+00> : vector<16xf32>
    %20 = vector.multi_reduction <add>, %19, %cst_7 [1] : vector<16x32xf32> to vector<16xf32>
    %21 = vector.shape_cast %20 : vector<16xf32> to vector<16x1xf32>
    %22 = tpu.iota {dimensions = array<i32: 1>} : vector<1x2xi32>
    %c0_i32 = arith.constant 0 : i32
    %23 = vector.broadcast %c0_i32 : i32 to vector<1x2xi32>
    %24 = arith.cmpi eq, %22, %23 : vector<1x2xi32>
    %25 = vector.shape_cast %24 : vector<1x2xi1> to vector<1x2xi1>
    %26 = vector.broadcast %25 : vector<1x2xi1> to vector<16x2xi1>
    %27 = vector.shape_cast %14 : vector<16x1xf32> to vector<16x1xf32>
    %28 = vector.broadcast %27 : vector<16x1xf32> to vector<16x2xf32>
    %29 = vector.shape_cast %21 : vector<16x1xf32> to vector<16x1xf32>
    %30 = vector.broadcast %29 : vector<16x1xf32> to vector<16x2xf32>
    %31 = arith.select %26, %28, %30 : vector<16x2xi1>, vector<16x2xf32>
    %cst_8 = arith.constant dense<0.000000e+00> : vector<2xf32>
    %32 = vector.multi_reduction <add>, %31, %cst_8 [0] : vector<16x2xf32> to vector<2xf32>
    %33 = vector.shape_cast %32 : vector<2xf32> to vector<1x2xf32>
    %c0_9 = arith.constant 0 : index
    %c0_10 = arith.constant 0 : index
    %c0_11 = arith.constant 0 : index
    %34 = vector.load %arg4[%c0_9, %c0_10, %c0_11] : memref<1x1x2xf32, #tpu.memory_space<vmem>>, vector<1x1x2xf32>
    %35 = vector.shape_cast %34 : vector<1x1x2xf32> to vector<1x2xf32>
    %36 = vector.shape_cast %33 : vector<1x2xf32> to vector<1x1x2xf32>
    tpu.vector_store %arg4[%c0_9, %c0_10, %c0_11], %36 {strides = array<i32>} : memref<1x1x2xf32, #tpu.memory_space<vmem>>, vector<1x1x2xf32>,
    return
  }
  func.func @transform_0(%arg0: i32) -> (i32, i32) {
    %c0_i32 = arith.constant 0 : i32
    %c0_i32_0 = arith.constant 0 : i32
    return %arg0, %c0_i32 : i32, i32
  }
  func.func @transform_1(%arg0: i32) -> (i32, i32) {
    %c0_i32 = arith.constant 0 : i32
    %c0_i32_0 = arith.constant 0 : i32
    return %arg0, %c0_i32 : i32, i32
  }
  func.func @transform_2(%arg0: i32) -> (i32, i32) {
    %c0_i32 = arith.constant 0 : i32
    %c0_i32_0 = arith.constant 0 : i32
    return %arg0, %c0_i32 : i32, i32
  }
  func.func @transform_3(%arg0: i32) -> (i32, i32, i32) {
    %c0_i32 = arith.constant 0 : i32
    %c0_i32_0 = arith.constant 0 : i32
    %c0_i32_1 = arith.constant 0 : i32
    return %arg0, %c0_i32, %c0_i32_0 : i32, i32, i32
  }
}

</mosaic_0001>

<llo_original>
// kernel: tpu_custom_call.1
$region0: #{tpu_custom_call.1}
  #allocation0 [shape = 'u32[]', space=smem, size = 0x4, offset = 0x4, fixed_abs, tag = 'smem constant byte address 0x4 - core index']
  #allocation1 [shape = 'u32[144,128]{1,0:T(1,128)}', space=vmem, size = 0x12000, scoped, tag = 'internal scratch']
  %s0 = inlined_call_operand.hbm [shape: f32[16,32], index: 0, kind: input, shape index: {}]
  %s1 = inlined_call_operand.hbm [shape: f32[16,32], index: 1, kind: input, shape index: {}]
  %s2 = inlined_call_operand.hbm [shape: f32[16,32], index: 2, kind: input, shape index: {}]
  %s3 = inlined_call_operand.hbm [shape: f32[1,1,2], index: 3, kind: output, shape index: {}]
  %s4 = sld [smem:[#allocation0]]
  $region34: #{tpu_custom_call.1} parent=0
    _
  %s6 = ssub.s32 1, %s4
  %s7 = scalar_select 0, %s6, %s4
  $region1: #{tpu_custom_call.1} parent=0
    #allocation2 [shape = 'u8[8192]{0}', space=vmem, size = 0x2000, scoped, tag = 'input window, operand 0, single buffered']
    #allocation3 [shape = 's32[1]{0}', space=sflag, size = 0x4, scoped, tag = 'scoped memory for tpu_custom_call.1']
    #allocation4 [shape = 's32[1]{0}', space=sflag, size = 0x4, scoped, tag = 'scoped memory for tpu_custom_call.1']
    #allocation5 [shape = 'u8[8192]{0}', space=vmem, size = 0x2000, scoped, tag = 'input window, operand 1, single buffered']
    #allocation6 [shape = 's32[1]{0}', space=sflag, size = 0x4, scoped, tag = 'scoped memory for tpu_custom_call.1']
    #allocation7 [shape = 'u8[8192]{0}', space=vmem, size = 0x2000, scoped, tag = 'input window, operand 2, single buffered']
    #allocation8 [shape = 'u8[512]{0}', space=vmem, size = 0x400, scoped, tag = 'output window, operand 0, single buffered']
    %8 = vsyncpa [#allocation3], 0
    %9 = vsyncpa [#allocation6], 0
    %10 = vsyncpa [#allocation4], 0
    // Predicated region
    $region2: #{tpu_custom_call.1} parent=1 // pred_check
      _
    $region3: #{tpu_custom_call.1} parent=1 // pred_check_branch
      %12 = sbr.rel (0) target = $region5
    $region4: #{tpu_custom_call.1} parent=1 // pred_region
      %s14 = ssub.s32 256, 256
      %15 = vsyncadd [#allocation3], %s14
      %s16 = sshll.u32 [#allocation2], 4
      %s17 = int_to_ptr.vmem [resolvable:$true] %s16
      %22 = dma.hbm_to_vmem [thread:$0]  %s0, 256, %s17, [#allocation3], 128, 128, 8
    $region5: #{tpu_custom_call.1} parent=1 // pred_fallthru
      _
    // Predicated region
    $region6: #{tpu_custom_call.1} parent=1 // pred_check
      _
    $region7: #{tpu_custom_call.1} parent=1 // pred_check_branch
      %24 = sbr.rel (0) target = $region9
    $region8: #{tpu_custom_call.1} parent=1 // pred_region
      %s26 = ssub.s32 256, 256
      %27 = vsyncadd [#allocation6], %s26
      %s28 = sshll.u32 [#allocation5], 4
      %s29 = int_to_ptr.vmem [resolvable:$true] %s28
      %34 = dma.hbm_to_vmem [thread:$0]  %s1, 256, %s29, [#allocation6], 128, 128, 8
    $region9: #{tpu_custom_call.1} parent=1 // pred_fallthru
      _
    // Predicated region
    $region10: #{tpu_custom_call.1} parent=1 // pred_check
      _
    $region11: #{tpu_custom_call.1} parent=1 // pred_check_branch
      %36 = sbr.rel (0) target = $region13
    $region12: #{tpu_custom_call.1} parent=1 // pred_region
      %s38 = ssub.s32 256, 256
      %39 = vsyncadd [#allocation6], %s38
      %s40 = sshll.u32 [#allocation7], 4
      %s41 = int_to_ptr.vmem [resolvable:$true] %s40
      %46 = dma.hbm_to_vmem [thread:$0]  %s2, 256, %s41, [#allocation6], 128, 128, 8
    $region13: #{tpu_custom_call.1} parent=1 // pred_fallthru
      _
    // Predicated region
    $region14: #{tpu_custom_call.1} parent=1 // pred_check
      _
    $region15: #{tpu_custom_call.1} parent=1 // pred_check_branch
      %48 = sbr.rel (0) target = $region17
    $region16: #{tpu_custom_call.1} parent=1 // pred_region
      %49 = dma.done [#allocation3], 256
    $region17: #{tpu_custom_call.1} parent=1 // pred_fallthru
      _
    // Predicated region
    $region18: #{tpu_custom_call.1} parent=1 // pred_check
      _
    $region19: #{tpu_custom_call.1} parent=1 // pred_check_branch
      %51 = sbr.rel (0) target = $region21
    $region20: #{tpu_custom_call.1} parent=1 // pred_region
      %52 = dma.done [#allocation6], 256
    $region21: #{tpu_custom_call.1} parent=1 // pred_fallthru
      _
    // Predicated region
    $region22: #{tpu_custom_call.1} parent=1 // pred_check
      _
    $region23: #{tpu_custom_call.1} parent=1 // pred_check_branch
      %54 = sbr.rel (0) target = $region25
    $region24: #{tpu_custom_call.1} parent=1 // pred_region
      %55 = dma.done [#allocation6], 256
    $region25: #{tpu_custom_call.1} parent=1 // pred_fallthru
      _
    %v56 = vld [vmem:[#allocation2] sm:$0xff]
    %v57 = vld [vmem:[#allocation2 + $0x8] sm:$0xff]
    %v58 = vld [vmem:[#allocation5] sm:$0xff]
    %v59 = vld [vmem:[#allocation5 + $0x8] sm:$0xff]
    %v60 = vld [vmem:[#allocation7] sm:$0xff]
    %v61 = vld [vmem:[#allocation7 + $0x8] sm:$0xff]
    %v62 = vsub.f32 %v60, %v58
    %v63 = vsub.f32 %v61, %v59
    %v64 = vmul.f32 %v56, %v62
    %v65 = vmul.f32 %v57, %v63
    %vm66 = vcmask 261120
    %v67 = vsel %vm66, %v64, 0.0
    %68 = vadd.xlane.f32.xlu0 %v67
    %v69 = vpop.xlane.xlu0 %68
    %v70 = vsel %vm66, %v65, 0.0
    %71 = vadd.xlane.f32.xlu0 %v70
    %v72 = vpop.xlane.xlu0 %71
    %v73 = vmax.f32 %v69, 0.0
    %v74 = vmax.f32 %v72, 0.0
    %v75 = vand.u32 2147483647, %v69
    %v76 = vand.u32 2147483647, %v72
    %v77 = vsub.f32 0.0, %v75
    %v78 = vsub.f32 0.0, %v76
    %v79 = vmul.f32 %v77, 1.442695
    %v80 = vpow.pop %v79
    %v81 = vmul.f32 %v78, 1.442695
    %v82 = vpow.pop %v81
    %v83 = vadd.f32 %v80, 1.0
    %v84 = vlog2.pop %v83
    %v85 = vmul.f32 %v84, 0.6931472
    %v86 = vmul.f32 -0.5, %v80
    %v87 = vadd.f32 %v86, 1.0
    %v88 = vmul.f32 %v87, %v80
    %v89 = vand.u32 2147483647, %v80
    %vm90 = vcmp.lt.f32.partialorder %v89, 0.0004427343
    %v91 = vsel %vm90, %v88, %v85
    %v92 = vadd.f32 %v82, 1.0
    %v93 = vlog2.pop %v92
    %v94 = vmul.f32 %v93, 0.6931472
    %v95 = vmul.f32 -0.5, %v82
    %v96 = vadd.f32 %v95, 1.0
    %v97 = vmul.f32 %v96, %v82
    %v98 = vand.u32 2147483647, %v82
    %vm99 = vcmp.lt.f32.partialorder %v98, 0.0004427343
    %v100 = vsel %vm99, %v97, %v94
    %v101 = vadd.f32 %v73, %v91
    %v102 = vadd.f32 %v74, %v100
    %v103 = vmul.f32 %v56, %v56
    %v104 = vmul.f32 %v57, %v57
    %v105 = vmul.f32 %v58, %v58
    %v106 = vmul.f32 %v59, %v59
    %v107 = vadd.f32 %v103, %v105
    %v108 = vadd.f32 %v104, %v106
    %v109 = vmul.f32 %v60, %v60
    %v110 = vmul.f32 %v61, %v61
    %v111 = vadd.f32 %v107, %v109
    %v112 = vadd.f32 %v108, %v110
    %v113 = vsel %vm66, %v111, 0.0
    %114 = vadd.xlane.f32.xlu0 %v113
    %v115 = vpop.xlane.xlu0 %114
    %v116 = vsel %vm66, %v112, 0.0
    %117 = vadd.xlane.f32.xlu0 %v116
    %v118 = vpop.xlane.xlu0 %117
    %v119 = vlaneseq
    %v120 = vand.u32 %v119, 127
    %vm121 = vcmp.eq.s32.totalorder %v120, 0
    %v122 = vsel %vm121, 1, 0
    %vm123 = vcmp.eq.s32.totalorder %v122, 1
    %v124 = vsel %vm123, %v101, %v115
    %v125 = vsel %vm123, %v102, %v118
    %vm126 = vcmask 15360
    %v127 = vsel %vm126, %v124, 0.0
    %v128 = vsel %vm126, %v125, 0.0
    %v129 = vadd.f32 %v127, %v128
    %v130 = vrot.slane %v129, 4
    %v131 = vadd.f32 %v129, %v130
    %v132 = vrot.slane %v131, 2
    %v133 = vadd.f32 %v131, %v132
    %v134 = vrot.slane %v133, 1
    %v135 = vadd.f32 %v133, %v134
    %vm136 = vcmask 8192
    %137 = vst.msk [vmem:[#allocation8] sm:$0x1] %vm136, %v135
    // Predicated region
    $region26: #{tpu_custom_call.1} parent=1 // pred_check
      _
    $region27: #{tpu_custom_call.1} parent=1 // pred_check_branch
      %139 = sbr.rel (0) target = $region29
    $region28: #{tpu_custom_call.1} parent=1 // pred_region
      %s141 = ssub.s32 16, 16
      %142 = vsyncadd [#allocation4], %s141
      %s144 = sshll.u32 [#allocation8], 4
      %s145 = int_to_ptr.vmem [resolvable:$true] %s144
      %147 = dma.vmem_to_hbm [thread:$0]  %s145, 16, %s3, [#allocation4]
    $region29: #{tpu_custom_call.1} parent=1 // pred_fallthru
      _
    // Predicated region
    $region30: #{tpu_custom_call.1} parent=1 // pred_check
      _
    $region31: #{tpu_custom_call.1} parent=1 // pred_check_branch
      %149 = sbr.rel (0) target = $region33
    $region32: #{tpu_custom_call.1} parent=1 // pred_region
      %150 = dma.done [#allocation4], 16
    $region33: #{tpu_custom_call.1} parent=1 // pred_fallthru
      _
    %151 = vsyncpa [#allocation3], 1
    %152 = vsyncpa [#allocation6], 1
    %153 = vsyncpa [#allocation4], 1

</llo_original>
